<compile_context>
chip_gen: v7x
topology: tpu7x:2x2x1
jax: 0.10.0
libtpu: 0.0.40
codegen_flags: <defaults>
</compile_context>

<pallas_src>
import functools

import jax
import jax.numpy as jnp
from jax.experimental import pallas as pl
from jax.experimental.pallas import tpu as pltpu


# ---------------------------------------------------------------------------
# Stage 1 kernel: softmax / std / focal base term + per-tile sigma min/max
# ---------------------------------------------------------------------------
def _lasd_stage1_kernel(x_ref, tgt_ref, sigma_ref, base_ref, smin_ref, smax_ref,
                        *, num_classes, alpha, gamma, eps, onehot_eps,
                        hw, tile_rows, mask_tail):
    x = x_ref[...].astype(jnp.float32)          # (1, C, TS, 128) — cast post-DMA
    labels = tgt_ref[...]                       # (1, 1, TS, 128) int32

    # softmax over the channel (leading) axis; channel reductions are plain
    # VPU accumulations across dense (TS, 128) planes.
    m = jnp.max(x, axis=1, keepdims=True)
    xm = x - m
    e = jnp.exp(xm)                             # C * TS * 128 EUP ops
    s = jnp.sum(e, axis=1, keepdims=True)       # (1, 1, TS, 128)
    p = e * (1.0 / s) + eps                     # exact per-pixel reciprocal
    # log-softmax reuses xm and s: one log per pixel instead of C per pixel
    # (differs from log(softmax + eps) only for probabilities << eps).
    log_p = xm - jnp.log(s)

    # torch.std(dim=1): unbiased std over channels, centered form (avoids the
    # two-moment cancellation exactly where sigma is small).
    mean = jnp.sum(p, axis=1, keepdims=True) * (1.0 / num_classes)
    d = p - mean
    var = jnp.sum(d * d, axis=1, keepdims=True) * (1.0 / (num_classes - 1))
    sig = jnp.sqrt(var)                          # (1, 1, TS, 128)
    sigma_ref[...] = sig

    # one-hot with +1e-6 everywhere (label_to_one_hot_label semantics: labels
    # outside [0, C) contribute only the eps background).
    c_idx = jax.lax.broadcasted_iota(jnp.int32, p.shape, 1)
    onehot = (c_idx == labels).astype(jnp.float32) + onehot_eps

    one_minus_p = 1.0 - p
    if gamma == 2.0:
        weight = one_minus_p * one_minus_p       # VALU square, no EUP pow
    elif gamma == float(int(gamma)) and gamma >= 0.0:
        g = int(gamma)                           # exponentiation by squaring
        acc = jnp.maximum(one_minus_p, 0.0)
        weight = None
        while g:
            if g & 1:
                weight = acc if weight is None else weight * acc
            g >>= 1
            if g:
                acc = acc * acc
        if weight is None:                       # gamma == 0
            weight = jnp.ones_like(p)
    else:
        # clamp: p = softmax + eps can slightly exceed 1 -> avoid NaN in pow
        weight = jnp.power(jnp.maximum(one_minus_p, 0.0), gamma)

    focal = (-alpha) * weight * log_p
    base = jnp.sum(onehot * focal, axis=1, keepdims=True)   # (1, 1, TS, 128)

    if mask_tail:
        # HW padded up to R*128: exclude padded pixels from the loss sum and
        # from the MinMaxScaler's min/max.
        j = pl.program_id(1)
        row = jax.lax.broadcasted_iota(jnp.int32, sig.shape, 2)
        lane = jax.lax.broadcasted_iota(jnp.int32, sig.shape, 3)
        pix = (j * tile_rows + row) * 128 + lane
        valid = pix < hw
        base = jnp.where(valid, base, 0.0)
        sig_min_src = jnp.where(valid, sig, jnp.inf)
        sig_max_src = jnp.where(valid, sig, -jnp.inf)
    else:
        sig_min_src = sig
        sig_max_src = sig

    base_ref[...] = base
    # per-lane partials (sublane reduce only); tiny (1,1,1,128) per-tile block
    smin_ref[...] = jnp.min(sig_min_src, axis=2, keepdims=True)
    smax_ref[...] = jnp.max(sig_max_src, axis=2, keepdims=True)


# ---------------------------------------------------------------------------
# Stage 2 kernel: min-max scale sigma, beta balancing, per-tile loss partials
# ---------------------------------------------------------------------------
def _lasd_stage2_kernel(smin_ref, sinv_ref, sigma_ref, base_ref,
                        sig_out_ref, loss_ref):
    sig = (sigma_ref[...] - smin_ref[0]) * sinv_ref[0]       # (1, 1, TS2, 128)
    sig_out_ref[...] = sig
    beta = jnp.exp(-sig) + 1.0                                # == 1/exp(sig) + 1
    # padded pixels have base == 0, so no extra masking is needed here.
    loss_ref[...] = jnp.sum(base_ref[...] * beta, axis=2, keepdims=True)


# ---------------------------------------------------------------------------
# Tile selection.  Rows are blocks of 128 pixels.  Stage-1 block rows are
# VMEM-budgeted (safe for v7x's smaller scoped VMEM); stage-2 blocks are much
# larger since they only hold a few (TS2, 128) f32 planes.
# ---------------------------------------------------------------------------
def _pick_tiles(R0, C, tile_rows_1=None, tile_rows_2=None,
                vmem_budget=24 << 20, max_rows_1=64, max_rows_2=512):
    if tile_rows_1 is None:
        cap = vmem_budget // (128 * 4 * (6 * C + 16))   # rough live f32 planes
        tile_rows_1 = max(8, min(max_rows_1, (cap // 8) * 8))
    if R0 <= tile_rows_1:
        ts1 = R0          # single full-extent block (any R0 is legal)
        R = R0
    else:
        ts1 = max(8, (tile_rows_1 // 8) * 8)
        R = -(-R0 // ts1) * ts1                        # pad rows to a multiple
    n1 = R // ts1

    if tile_rows_2 is None:
        ts2 = ts1
        d = 1
        while True:
            d += 1
            cand = ts1 * d
            if cand > max_rows_2 or cand > R:
                break
            if R % cand == 0:
                ts2 = cand
    else:
        ts2 = tile_rows_2
    assert R % ts2 == 0 and (ts2 % 8 == 0 or ts2 == R), "invalid stage-2 tile"
    n2 = R // ts2
    return ts1, ts2, R, n1, n2


# ---------------------------------------------------------------------------
# Wrapper
# ---------------------------------------------------------------------------
def lasd_pallas(x_nchw, target, *, alpha=0.5, gamma=2.0, eps=1e-8,
                ignore_index=30, tile_rows_1=None, tile_rows_2=None):
    """Returns (loss, sigma_scaled) matching LASD.forward with reduction='mean'."""
    # TODO(synk): ignore_index only defines the one-hot split width in the
    # original (labels >= num_classes contribute just the eps background);
    # the kernel reproduces that, no extra masking is applied.
    N, C, H, W = x_nchw.shape
    HW = H * W
    R0 = -(-HW // 128)
    ts1, ts2, R, n1, n2 = _pick_tiles(R0, C, tile_rows_1, tile_rows_2)
    HWp = R * 128
    mask_tail = (HWp != HW)

    # keep logits in their native dtype (bf16 welcome); cast happens in-kernel
    x = x_nchw.reshape(N, C, HW)
    tgt = target.reshape(N, 1, HW).astype(jnp.int32)
    if mask_tail:
        x = jnp.pad(x, ((0, 0), (0, 0), (0, HWp - HW)))
        tgt = jnp.pad(tgt, ((0, 0), (0, 0), (0, HWp - HW)))
    x = x.reshape(N, C, R, 128)
    tgt = tgt.reshape(N, 1, R, 128)

    # ---------------- stage 1 ----------------
    stage1 = pl.pallas_call(
        functools.partial(_lasd_stage1_kernel,
                          num_classes=C, alpha=float(alpha), gamma=float(gamma),
                          eps=float(eps), onehot_eps=1e-6,
                          hw=HW, tile_rows=ts1, mask_tail=mask_tail),
        grid=(N, n1),
        in_specs=[
            pl.BlockSpec((1, C, ts1, 128), lambda i, j: (i, 0, j, 0)),
            pl.BlockSpec((1, 1, ts1, 128), lambda i, j: (i, 0, j, 0)),
        ],
        out_specs=[
            pl.BlockSpec((1, 1, ts1, 128), lambda i, j: (i, 0, j, 0)),
            pl.BlockSpec((1, 1, ts1, 128), lambda i, j: (i, 0, j, 0)),
            pl.BlockSpec((1, 1, 1, 128), lambda i, j: (i, j, 0, 0)),   # sigma min
            pl.BlockSpec((1, 1, 1, 128), lambda i, j: (i, j, 0, 0)),   # sigma max
        ],
        out_shape=(
            jax.ShapeDtypeStruct((N, 1, R, 128), jnp.float32),   # raw sigma
            jax.ShapeDtypeStruct((N, 1, R, 128), jnp.float32),   # focal base
            jax.ShapeDtypeStruct((N, n1, 1, 128), jnp.float32),  # min partials
            jax.ShapeDtypeStruct((N, n1, 1, 128), jnp.float32),  # max partials
        ),
        compiler_params=pltpu.CompilerParams(
            dimension_semantics=("parallel", "parallel")),
    )
    sigma_raw, base, smin_part, smax_part = stage1(x, tgt)

    # tiny reduction over the per-tile per-lane partials (MinMaxScaler glue)
    smin = jnp.min(smin_part)
    smax = jnp.max(smax_part)
    den = smax - smin
    sinv = jnp.where(den > 0, 1.0 / den, 1.0)   # sklearn: zero range -> scale 1
    smin_arr = smin.reshape(1).astype(jnp.float32)
    sinv_arr = sinv.reshape(1).astype(jnp.float32)

    # ---------------- stage 2 ----------------
    stage2 = pl.pallas_call(
        _lasd_stage2_kernel,
        grid_spec=pltpu.PrefetchScalarGridSpec(
            num_scalar_prefetch=2,
            grid=(N, n2),
            in_specs=[
                pl.BlockSpec((1, 1, ts2, 128), lambda i, j, *_: (i, 0, j, 0)),
                pl.BlockSpec((1, 1, ts2, 128), lambda i, j, *_: (i, 0, j, 0)),
            ],
            out_specs=[
                pl.BlockSpec((1, 1, ts2, 128), lambda i, j, *_: (i, 0, j, 0)),
                pl.BlockSpec((1, 1, 1, 128), lambda i, j, *_: (i, j, 0, 0)),
            ],
        ),
        out_shape=(
            jax.ShapeDtypeStruct((N, 1, R, 128), jnp.float32),    # scaled sigma
            jax.ShapeDtypeStruct((N, n2, 1, 128), jnp.float32),   # loss partials
        ),
        compiler_params=pltpu.CompilerParams(
            dimension_semantics=("parallel", "parallel")),
    )
    sigma_scaled, loss_part = stage2(smin_arr, sinv_arr, sigma_raw, base)

    # reduction == 'mean': mean(mean(loss_tmp, dim=0)) == mean over N*C*H*W
    loss = jnp.sum(loss_part) / (N * C * H * W)
    sigma_out = sigma_scaled.reshape(N, HWp)[:, :HW].reshape(N, H, W)
    return loss, sigma_out


# ---------------------------------------------------------------------------
# Pure-JAX reference (mirrors lasd_f semantics) for a sanity check
# ---------------------------------------------------------------------------
def lasd_ref(x, target, *, alpha=0.5, gamma=2.0, eps=1e-8):
    N, C, H, W = x.shape
    p = jax.nn.softmax(x.astype(jnp.float32), axis=1) + eps
    sigma = jnp.std(p, axis=1, ddof=1)
    smin, smax = jnp.min(sigma), jnp.max(sigma)
    sig_scaled = (sigma - smin) / (smax - smin)
    beta = 1.0 / jnp.exp(sig_scaled) + 1.0
    onehot = (target[:, None, :, :] == jnp.arange(C)[None, :, None, None]
              ).astype(jnp.float32) + 1e-6
    focal = -alpha * jnp.power(1.0 - p, gamma) * jnp.log(p)
    focal = focal * beta[:, None, :, :]
    loss = jnp.mean(onehot * focal)
    return loss, sig_scaled


if __name__ == "__main__":
    key = jax.random.PRNGKey(0)
    kx1, kt1, kx2, kt2, kx3, kt3 = jax.random.split(key, 6)

    # Case 1: module-typical small shape; single-tile fast path.
    N, C, H, W = 2, 4, 16, 16
    x = jax.random.normal(kx1, (N, C, H, W), dtype=jnp.float32)
    target = jax.random.randint(kt1, (N, H, W), 0, C, dtype=jnp.int32)
    loss_r, sig_r = lasd_ref(x, target)
    loss, sig = lasd_pallas(x, target, alpha=0.5, gamma=2.0, eps=1e-8)
    jax.block_until_ready((loss, sig))
    assert jnp.allclose(loss, loss_r, rtol=2e-4, atol=1e-6), (loss, loss_r)
    assert jnp.allclose(sig, sig_r, rtol=1e-3, atol=1e-4)

    # Case 2: spatial size not a multiple of 128 -> exercises tail masking.
    N, C, H, W = 2, 5, 15, 15
    x = jax.random.normal(kx2, (N, C, H, W), dtype=jnp.float32)
    target = jax.random.randint(kt2, (N, H, W), 0, C, dtype=jnp.int32)
    loss_r, sig_r = lasd_ref(x, target)
    loss, sig = lasd_pallas(x, target)
    jax.block_until_ready((loss, sig))
    assert jnp.allclose(loss, loss_r, rtol=2e-4, atol=1e-6), (loss, loss_r)
    assert jnp.allclose(sig, sig_r, rtol=1e-3, atol=1e-4)

    # Case 3: forced multi-tile grids (per-tile min/max and loss partials).
    N, C, H, W = 1, 4, 64, 64
    x = jax.random.normal(kx3, (N, C, H, W), dtype=jnp.float32)
    target = jax.random.randint(kt3, (N, H, W), 0, C, dtype=jnp.int32)
    loss_r, sig_r = lasd_ref(x, target)
    loss, sig = lasd_pallas(x, target, tile_rows_1=8, tile_rows_2=16)
    jax.block_until_ready((loss, sig))
    assert jnp.allclose(loss, loss_r, rtol=2e-4, atol=1e-6), (loss, loss_r)
    assert jnp.allclose(sig, sig_r, rtol=1e-3, atol=1e-4)

    print("KERNEL_OK")
</pallas_src>

<mosaic_0001>
module attributes {stable_mosaic.version = 11 : i64} {
  func.func @_lasd_stage1_kernel(%arg0: i32, %arg1: i32, %arg2: memref<1x4x2x128xf32, #tpu.memory_space<vmem>>, %arg3: memref<1x1x2x128xi32, #tpu.memory_space<vmem>>, %arg4: memref<1x1x2x128xf32, #tpu.memory_space<vmem>>, %arg5: memref<1x1x2x128xf32, #tpu.memory_space<vmem>>, %arg6: memref<1x1x1x128xf32, #tpu.memory_space<vmem>>, %arg7: memref<1x1x1x128xf32, #tpu.memory_space<vmem>>) attributes {dimension_semantics = [#tpu.dimension_semantics<parallel>, #tpu.dimension_semantics<parallel>], iteration_bounds = array<i64: 2, 1>, scalar_prefetch = 0 : i64, scratch_operands = 0 : i64, tpu.core_type = #tpu.core_type<tc>, window_params = [{transform_indices = @transform_0, window_bounds = array<i64: 1, 4, 2, 128>}, {transform_indices = @transform_1, window_bounds = array<i64: 1, 1, 2, 128>}, {transform_indices = @transform_2, window_bounds = array<i64: 1, 1, 2, 128>}, {transform_indices = @transform_3, window_bounds = array<i64: 1, 1, 2, 128>}, {transform_indices = @transform_4, window_bounds = array<i64: 1, 1, 1, 128>}, {transform_indices = @transform_5, window_bounds = array<i64: 1, 1, 1, 128>}]} {
    %c0 = arith.constant 0 : index
    %c0_0 = arith.constant 0 : index
    %c0_1 = arith.constant 0 : index
    %c0_2 = arith.constant 0 : index
    %0 = vector.load %arg2[%c0, %c0_0, %c0_1, %c0_2] : memref<1x4x2x128xf32, #tpu.memory_space<vmem>>, vector<1x4x2x128xf32>
    %c0_3 = arith.constant 0 : index
    %c0_4 = arith.constant 0 : index
    %c0_5 = arith.constant 0 : index
    %c0_6 = arith.constant 0 : index
    %1 = vector.load %arg3[%c0_3, %c0_4, %c0_5, %c0_6] : memref<1x1x2x128xi32, #tpu.memory_space<vmem>>, vector<1x1x2x128xi32>
    %cst = arith.constant dense<0xFF800000> : vector<1x2x128xf32>
    %2 = vector.multi_reduction <maximumf>, %0, %cst [1] : vector<1x4x2x128xf32> to vector<1x2x128xf32>
    %3 = vector.shape_cast %2 : vector<1x2x128xf32> to vector<1x1x2x128xf32>
    %4 = vector.broadcast %3 : vector<1x1x2x128xf32> to vector<1x4x2x128xf32>
    %5 = arith.subf %0, %4 : vector<1x4x2x128xf32>
    %6 = math.exp %5 : vector<1x4x2x128xf32>
    %cst_7 = arith.constant dense<0.000000e+00> : vector<1x2x128xf32>
    %7 = vector.multi_reduction <add>, %6, %cst_7 [1] : vector<1x4x2x128xf32> to vector<1x2x128xf32>
    %8 = vector.shape_cast %7 : vector<1x2x128xf32> to vector<1x1x2x128xf32>
    %cst_8 = arith.constant 1.000000e+00 : f32
    %9 = vector.broadcast %cst_8 : f32 to vector<1x1x2x128xf32>
    %10 = arith.divf %9, %8 : vector<1x1x2x128xf32>
    %11 = vector.broadcast %10 : vector<1x1x2x128xf32> to vector<1x4x2x128xf32>
    %12 = arith.mulf %6, %11 : vector<1x4x2x128xf32>
    %cst_9 = arith.constant 9.99999993E-9 : f32
    %13 = vector.broadcast %cst_9 : f32 to vector<1x4x2x128xf32>
    %14 = arith.addf %12, %13 : vector<1x4x2x128xf32>
    %15 = math.log %8 : vector<1x1x2x128xf32>
    %16 = vector.broadcast %15 : vector<1x1x2x128xf32> to vector<1x4x2x128xf32>
    %17 = arith.subf %5, %16 : vector<1x4x2x128xf32>
    %cst_10 = arith.constant dense<0.000000e+00> : vector<1x2x128xf32>
    %18 = vector.multi_reduction <add>, %14, %cst_10 [1] : vector<1x4x2x128xf32> to vector<1x2x128xf32>
    %19 = vector.shape_cast %18 : vector<1x2x128xf32> to vector<1x1x2x128xf32>
    %cst_11 = arith.constant 2.500000e-01 : f32
    %20 = vector.broadcast %cst_11 : f32 to vector<1x1x2x128xf32>
    %21 = arith.mulf %19, %20 : vector<1x1x2x128xf32>
    %22 = vector.broadcast %21 : vector<1x1x2x128xf32> to vector<1x4x2x128xf32>
    %23 = arith.subf %14, %22 : vector<1x4x2x128xf32>
    %24 = arith.mulf %23, %23 : vector<1x4x2x128xf32>
    %cst_12 = arith.constant dense<0.000000e+00> : vector<1x2x128xf32>
    %25 = vector.multi_reduction <add>, %24, %cst_12 [1] : vector<1x4x2x128xf32> to vector<1x2x128xf32>
    %26 = vector.shape_cast %25 : vector<1x2x128xf32> to vector<1x1x2x128xf32>
    %cst_13 = arith.constant 0.333333343 : f32
    %27 = vector.broadcast %cst_13 : f32 to vector<1x1x2x128xf32>
    %28 = arith.mulf %26, %27 : vector<1x1x2x128xf32>
    %29 = math.sqrt %28 : vector<1x1x2x128xf32>
    %c0_14 = arith.constant 0 : index
    %c0_15 = arith.constant 0 : index
    %c0_16 = arith.constant 0 : index
    %c0_17 = arith.constant 0 : index
    %30 = vector.load %arg4[%c0_14, %c0_15, %c0_16, %c0_17] : memref<1x1x2x128xf32, #tpu.memory_space<vmem>>, vector<1x1x2x128xf32>
    tpu.vector_store %arg4[%c0_14, %c0_15, %c0_16, %c0_17], %29 {strides = array<i32>} : memref<1x1x2x128xf32, #tpu.memory_space<vmem>>, vector<1x1x2x128xf32>,
    %31 = tpu.iota {dimensions = array<i32: 1>} : vector<1x4x2x128xi32>
    %32 = vector.broadcast %1 : vector<1x1x2x128xi32> to vector<1x4x2x128xi32>
    %33 = arith.cmpi eq, %31, %32 : vector<1x4x2x128xi32>
    %34 = arith.extui %33 : vector<1x4x2x128xi1> to vector<1x4x2x128xi32>
    %35 = arith.sitofp %34 : vector<1x4x2x128xi32> to vector<1x4x2x128xf32>
    %cst_18 = arith.constant 9.99999997E-7 : f32
    %36 = vector.broadcast %cst_18 : f32 to vector<1x4x2x128xf32>
    %37 = arith.addf %35, %36 : vector<1x4x2x128xf32>
    %cst_19 = arith.constant 1.000000e+00 : f32
    %38 = vector.broadcast %cst_19 : f32 to vector<1x4x2x128xf32>
    %39 = arith.subf %38, %14 : vector<1x4x2x128xf32>
    %40 = arith.mulf %39, %39 : vector<1x4x2x128xf32>
    %cst_20 = arith.constant -5.000000e-01 : f32
    %41 = vector.broadcast %cst_20 : f32 to vector<1x4x2x128xf32>
    %42 = arith.mulf %41, %40 : vector<1x4x2x128xf32>
    %43 = arith.mulf %42, %17 : vector<1x4x2x128xf32>
    %44 = arith.mulf %37, %43 : vector<1x4x2x128xf32>
    %cst_21 = arith.constant dense<0.000000e+00> : vector<1x2x128xf32>
    %45 = vector.multi_reduction <add>, %44, %cst_21 [1] : vector<1x4x2x128xf32> to vector<1x2x128xf32>
    %46 = vector.shape_cast %45 : vector<1x2x128xf32> to vector<1x1x2x128xf32>
    %c0_22 = arith.constant 0 : index
    %c0_23 = arith.constant 0 : index
    %c0_24 = arith.constant 0 : index
    %c0_25 = arith.constant 0 : index
    %47 = vector.load %arg5[%c0_22, %c0_23, %c0_24, %c0_25] : memref<1x1x2x128xf32, #tpu.memory_space<vmem>>, vector<1x1x2x128xf32>
    tpu.vector_store %arg5[%c0_22, %c0_23, %c0_24, %c0_25], %46 {strides = array<i32>} : memref<1x1x2x128xf32, #tpu.memory_space<vmem>>, vector<1x1x2x128xf32>,
    %cst_26 = arith.constant dense<0x7F800000> : vector<1x1x128xf32>
    %48 = vector.multi_reduction <minimumf>, %29, %cst_26 [2] : vector<1x1x2x128xf32> to vector<1x1x128xf32>
    %49 = vector.shape_cast %48 : vector<1x1x128xf32> to vector<1x1x1x128xf32>
    %c0_27 = arith.constant 0 : index
    %c0_28 = arith.constant 0 : index
    %c0_29 = arith.constant 0 : index
    %c0_30 = arith.constant 0 : index
    %50 = vector.load %arg6[%c0_27, %c0_28, %c0_29, %c0_30] : memref<1x1x1x128xf32, #tpu.memory_space<vmem>>, vector<1x1x1x128xf32>
    tpu.vector_store %arg6[%c0_27, %c0_28, %c0_29, %c0_30], %49 {strides = array<i32>} : memref<1x1x1x128xf32, #tpu.memory_space<vmem>>, vector<1x1x1x128xf32>,
    %cst_31 = arith.constant dense<0xFF800000> : vector<1x1x128xf32>
    %51 = vector.multi_reduction <maximumf>, %29, %cst_31 [2] : vector<1x1x2x128xf32> to vector<1x1x128xf32>
    %52 = vector.shape_cast %51 : vector<1x1x128xf32> to vector<1x1x1x128xf32>
    %c0_32 = arith.constant 0 : index
    %c0_33 = arith.constant 0 : index
    %c0_34 = arith.constant 0 : index
    %c0_35 = arith.constant 0 : index
    %53 = vector.load %arg7[%c0_32, %c0_33, %c0_34, %c0_35] : memref<1x1x1x128xf32, #tpu.memory_space<vmem>>, vector<1x1x1x128xf32>
    tpu.vector_store %arg7[%c0_32, %c0_33, %c0_34, %c0_35], %52 {strides = array<i32>} : memref<1x1x1x128xf32, #tpu.memory_space<vmem>>, vector<1x1x1x128xf32>,
    return
  }
  func.func @transform_0(%arg0: i32, %arg1: i32) -> (i32, i32, i32, i32) {
    %c0_i32 = arith.constant 0 : i32
    %c0_i32_0 = arith.constant 0 : i32
    %c0_i32_1 = arith.constant 0 : i32
    return %arg0, %c0_i32, %arg1, %c0_i32_0 : i32, i32, i32, i32
  }
  func.func @transform_1(%arg0: i32, %arg1: i32) -> (i32, i32, i32, i32) {
    %c0_i32 = arith.constant 0 : i32
    %c0_i32_0 = arith.constant 0 : i32
    %c0_i32_1 = arith.constant 0 : i32
    return %arg0, %c0_i32, %arg1, %c0_i32_0 : i32, i32, i32, i32
  }
  func.func @transform_2(%arg0: i32, %arg1: i32) -> (i32, i32, i32, i32) {
    %c0_i32 = arith.constant 0 : i32
    %c0_i32_0 = arith.constant 0 : i32
    %c0_i32_1 = arith.constant 0 : i32
    return %arg0, %c0_i32, %arg1, %c0_i32_0 : i32, i32, i32, i32
  }
  func.func @transform_3(%arg0: i32, %arg1: i32) -> (i32, i32, i32, i32) {
    %c0_i32 = arith.constant 0 : i32
    %c0_i32_0 = arith.constant 0 : i32
    %c0_i32_1 = arith.constant 0 : i32
    return %arg0, %c0_i32, %arg1, %c0_i32_0 : i32, i32, i32, i32
  }
  func.func @transform_4(%arg0: i32, %arg1: i32) -> (i32, i32, i32, i32) {
    %c0_i32 = arith.constant 0 : i32
    %c0_i32_0 = arith.constant 0 : i32
    %c0_i32_1 = arith.constant 0 : i32
    return %arg0, %arg1, %c0_i32, %c0_i32_0 : i32, i32, i32, i32
  }
  func.func @transform_5(%arg0: i32, %arg1: i32) -> (i32, i32, i32, i32) {
    %c0_i32 = arith.constant 0 : i32
    %c0_i32_0 = arith.constant 0 : i32
    %c0_i32_1 = arith.constant 0 : i32
    return %arg0, %arg1, %c0_i32, %c0_i32_0 : i32, i32, i32, i32
  }
}

</mosaic_0001>

<llo_original>
// kernel: tpu_custom_call.1
$region0: #{tpu_custom_call.1}
  #allocation0 [shape = 'u32[]', space=smem, size = 0x4, offset = 0x4, fixed_abs, tag = 'smem constant byte address 0x4 - core index']
  #allocation1 [shape = 'u32[144,128]{1,0:T(1,128)}', space=vmem, size = 0x12000, scoped, tag = 'internal scratch']
  %s0 = inlined_call_operand.hbm [shape: f32[2,4,2,128], index: 0, kind: input, shape index: {}]
  %s1 = inlined_call_operand.hbm [shape: s32[2,1,2,128], index: 1, kind: input, shape index: {}]
  %s2 = inlined_call_operand.hbm [shape: f32[2,1,2,128], index: 2, kind: output, shape index: {0}]
  %s3 = inlined_call_operand.hbm [shape: f32[2,1,2,128], index: 3, kind: output, shape index: {1}]
  %s4 = inlined_call_operand.hbm [shape: f32[2,1,1,128], index: 4, kind: output, shape index: {2}]
  %s5 = inlined_call_operand.hbm [shape: f32[2,1,1,128], index: 5, kind: output, shape index: {3}]
  %6 = xla_tuple %s2, %s3, %s4, %s5
  %s7 = sld [smem:[#allocation0]]
  $region73: #{tpu_custom_call.1} parent=0
    _
  %s9 = ssub.s32 1, %s7
  %s10 = scalar_select 0, %s9, %s7
  $region1: #{tpu_custom_call.1} parent=0
    #allocation2 [shape = 'u8[8192]{0}', space=vmem, size = 0x2000, scoped, tag = 'input window, operand 0']
    #allocation3 [shape = 's32[2]{0}', space=sflag, size = 0x8, scoped, tag = 'scoped memory for tpu_custom_call.1']
    #allocation4 [shape = 's32[2]{0}', space=sflag, size = 0x8, scoped, tag = 'scoped memory for tpu_custom_call.1']
    #allocation5 [shape = 'u8[2048]{0}', space=vmem, size = 0x800, scoped, tag = 'input window, operand 1']
    #allocation6 [shape = 's32[2]{0}', space=sflag, size = 0x8, scoped, tag = 'scoped memory for tpu_custom_call.1']
    #allocation7 [shape = 'u8[2048]{0}', space=vmem, size = 0x800, scoped, tag = 'output window, operand 0']
    #allocation8 [shape = 'u8[2048]{0}', space=vmem, size = 0x800, scoped, tag = 'output window, operand 1']
    #allocation9 [shape = 's32[2]{0}', space=sflag, size = 0x8, scoped, tag = 'scoped memory for tpu_custom_call.1']
    #allocation10 [shape = 'u8[1024]{0}', space=vmem, size = 0x400, scoped, tag = 'output window, operand 2']
    #allocation11 [shape = 'u8[1024]{0}', space=vmem, size = 0x400, scoped, tag = 'output window, operand 3']
    #allocation12 [shape = 's32[2]{0}', space=sflag, size = 0x8, scoped, tag = 'scoped memory for tpu_custom_call.1']
    %11 = vsyncpa [#allocation3], 0
    %s12 = scalar_lea.sflag [#allocation3], 1
    %13 = vsyncpa %s12, 0
    %14 = vsyncpa [#allocation6], 0
    %s15 = scalar_lea.sflag [#allocation6], 1
    %16 = vsyncpa %s15, 0
    %17 = vsyncpa [#allocation4], 0
    %s18 = scalar_lea.sflag [#allocation4], 1
    %19 = vsyncpa %s18, 0
    %20 = vsyncpa [#allocation9], 0
    %s21 = scalar_lea.sflag [#allocation9], 1
    %22 = vsyncpa %s21, 0
    %23 = vsyncpa [#allocation12], 0
    %s24 = scalar_lea.sflag [#allocation12], 1
    %25 = vsyncpa %s24, 0
    loop: start=0, step=1, limit=4
    $region2: #{tpu_custom_call.1} parent=1 // loop_pre_header
      _
    $region3: #{tpu_custom_call.1} parent=1 // loop_header
      %s27 = sphi 0, %s31
      %p28 = scmp.ge.s32.totalorder %s27, 4
      %s34 = sphi 0, %s46
      %s35 = sphi 0, %s42
      %s36 = sphi 0, %s34
      %s37 = sphi 0, %s35
      %s38 = sphi 0, %s36
      %s39 = sphi 0, %s37
      %s51 = sphi 0, %s53
      %s54 = sphi 0, %s51
      %s55 = sphi 0, %s54
      %s71 = sphi 0, %s55
      %s79 = sphi 0, %s81
      %s82 = sphi 0, %s79
      %s83 = sphi 0, %s82
      %s99 = sphi 0, %s83
      %s107 = sphi 0, %s109
      %s110 = sphi 0, %s107
      %s111 = sphi 0, %s110
      %s127 = sphi 0, %s111
      %s135 = sphi 0, %s137
      %s138 = sphi 0, %s135
      %s139 = sphi 0, %s138
      %s155 = sphi 0, %s139
      %s163 = sphi 0, %s165
      %s166 = sphi 0, %s163
      %s167 = sphi 0, %s166
      %s183 = sphi 0, %s167
      %s191 = sphi 0, %s193
      %s194 = sphi 0, %s191
      %s195 = sphi 0, %s194
      %s211 = sphi 0, %s195
    $region4: #{tpu_custom_call.1} parent=1 // loop_header_branch
      %30 = sbr.rel (%p28) target = $region8
    $region5: #{tpu_custom_call.1} parent=1 // loop_body
      %s32 = ssub.s32 %s27, 1
      %s33 = ssub.s32 %s27, 2
      %s40 = sadd.s32 1, %s35
      %p41 = scmp.ge.s32.totalorder %s40, 1
      %s42 = scalar_select %p41, 0, %s40
      %s43 = sadd.s32 1, %s34
      %s44 = scalar_select %p41, %s43, %s34
      %p45 = scmp.ge.s32.totalorder %s44, 2
      %s46 = scalar_select %p45, 0, %s44
      %s47 = ssub.s32 %s34, %s46
      %s48 = ssub.s32 %s35, %s42
      %s49 = sor.u32 %s47, %s48
      %p50 = scmp.eq.s32.totalorder %s49, 0
      %s52 = sadd.s32 %s51, 1
      %s53 = scalar_select %p50, %s51, %s52
      %p56 = pneg %p50
      %p57 = scmp.eq.s32.totalorder %s27, 1
      %p58 = por %p56, %p57
      %p59 = scmp.ne.s32.totalorder %s51, %s54
      %p60 = scmp.eq.s32.totalorder %s27, 0
      %p61 = por %p59, %p60
      %p62 = scmp.ne.s32.totalorder %s51, %s54
      %p63 = scmp.eq.s32.totalorder %s32, 1
      %p64 = por %p62, %p63
      %p65 = scmp.ne.s32.totalorder %s54, %s55
      %p66 = scmp.eq.s32.totalorder %s32, 0
      %p67 = por %p65, %p66
      %p68 = scmp.ne.s32.totalorder %s54, %s55
      %p69 = scmp.eq.s32.totalorder %s33, 1
      %p70 = por %p68, %p69
      %p72 = scmp.ne.s32.totalorder %s55, %s71
      %p73 = scmp.eq.s32.totalorder %s33, 0
      %p74 = por %p72, %p73
      %s75 = ssub.s32 %s34, %s46
      %s76 = ssub.s32 %s35, %s42
      %s77 = sor.u32 %s75, %s76
      %p78 = scmp.eq.s32.totalorder %s77, 0
      %s80 = sadd.s32 %s79, 1
      %s81 = scalar_select %p78, %s79, %s80
      %p84 = pneg %p78
      %p85 = scmp.eq.s32.totalorder %s27, 1
      %p86 = por %p84, %p85
      %p87 = scmp.ne.s32.totalorder %s79, %s82
      %p88 = scmp.eq.s32.totalorder %s27, 0
      %p89 = por %p87, %p88
      %p90 = scmp.ne.s32.totalorder %s79, %s82
      %p91 = scmp.eq.s32.totalorder %s32, 1
      %p92 = por %p90, %p91
      %p93 = scmp.ne.s32.totalorder %s82, %s83
      %p94 = scmp.eq.s32.totalorder %s32, 0
      %p95 = por %p93, %p94
      %p96 = scmp.ne.s32.totalorder %s82, %s83
      %p97 = scmp.eq.s32.totalorder %s33, 1
      %p98 = por %p96, %p97
      %p100 = scmp.ne.s32.totalorder %s83, %s99
      %p101 = scmp.eq.s32.totalorder %s33, 0
      %p102 = por %p100, %p101
      %s103 = ssub.s32 %s34, %s46
      %s104 = ssub.s32 %s35, %s42
      %s105 = sor.u32 %s103, %s104
      %p106 = scmp.eq.s32.totalorder %s105, 0
      %s108 = sadd.s32 %s107, 1
      %s109 = scalar_select %p106, %s107, %s108
      %p112 = pneg %p106
      %p113 = scmp.eq.s32.totalorder %s27, 1
      %p114 = por %p112, %p113
      %p115 = scmp.ne.s32.totalorder %s107, %s110
      %p116 = scmp.eq.s32.totalorder %s27, 0
      %p117 = por %p115, %p116
      %p118 = scmp.ne.s32.totalorder %s107, %s110
      %p119 = scmp.eq.s32.totalorder %s32, 1
      %p120 = por %p118, %p119
      %p121 = scmp.ne.s32.totalorder %s110, %s111
      %p122 = scmp.eq.s32.totalorder %s32, 0
      %p123 = por %p121, %p122
      %p124 = scmp.ne.s32.totalorder %s110, %s111
      %p125 = scmp.eq.s32.totalorder %s33, 1
      %p126 = por %p124, %p125
      %p128 = scmp.ne.s32.totalorder %s111, %s127
      %p129 = scmp.eq.s32.totalorder %s33, 0
      %p130 = por %p128, %p129
      %s131 = ssub.s32 %s34, %s46
      %s132 = ssub.s32 %s35, %s42
      %s133 = sor.u32 %s131, %s132
      %p134 = scmp.eq.s32.totalorder %s133, 0
      %s136 = sadd.s32 %s135, 1
      %s137 = scalar_select %p134, %s135, %s136
      %p140 = pneg %p134
      %p141 = scmp.eq.s32.totalorder %s27, 1
      %p142 = por %p140, %p141
      %p143 = scmp.ne.s32.totalorder %s135, %s138
      %p144 = scmp.eq.s32.totalorder %s27, 0
      %p145 = por %p143, %p144
      %p146 = scmp.ne.s32.totalorder %s135, %s138
      %p147 = scmp.eq.s32.totalorder %s32, 1
      %p148 = por %p146, %p147
      %p149 = scmp.ne.s32.totalorder %s138, %s139
      %p150 = scmp.eq.s32.totalorder %s32, 0
      %p151 = por %p149, %p150
      %p152 = scmp.ne.s32.totalorder %s138, %s139
      %p153 = scmp.eq.s32.totalorder %s33, 1
      %p154 = por %p152, %p153
      %p156 = scmp.ne.s32.totalorder %s139, %s155
      %p157 = scmp.eq.s32.totalorder %s33, 0
      %p158 = por %p156, %p157
      %s159 = ssub.s32 %s34, %s46
      %s160 = ssub.s32 %s35, %s42
      %s161 = sor.u32 %s159, %s160
      %p162 = scmp.eq.s32.totalorder %s161, 0
      %s164 = sadd.s32 %s163, 1
      %s165 = scalar_select %p162, %s163, %s164
      %p168 = pneg %p162
      %p169 = scmp.eq.s32.totalorder %s27, 1
      %p170 = por %p168, %p169
      %p171 = scmp.ne.s32.totalorder %s163, %s166
      %p172 = scmp.eq.s32.totalorder %s27, 0
      %p173 = por %p171, %p172
      %p174 = scmp.ne.s32.totalorder %s163, %s166
      %p175 = scmp.eq.s32.totalorder %s32, 1
      %p176 = por %p174, %p175
      %p177 = scmp.ne.s32.totalorder %s166, %s167
      %p178 = scmp.eq.s32.totalorder %s32, 0
      %p179 = por %p177, %p178
      %p180 = scmp.ne.s32.totalorder %s166, %s167
      %p181 = scmp.eq.s32.totalorder %s33, 1
      %p182 = por %p180, %p181
      %p184 = scmp.ne.s32.totalorder %s167, %s183
      %p185 = scmp.eq.s32.totalorder %s33, 0
      %p186 = por %p184, %p185
      %s187 = ssub.s32 %s34, %s46
      %s188 = ssub.s32 %s35, %s42
      %s189 = sor.u32 %s187, %s188
      %p190 = scmp.eq.s32.totalorder %s189, 0
      %s192 = sadd.s32 %s191, 1
      %s193 = scalar_select %p190, %s191, %s192
      %p196 = pneg %p190
      %p197 = scmp.eq.s32.totalorder %s27, 1
      %p198 = por %p196, %p197
      %p199 = scmp.ne.s32.totalorder %s191, %s194
      %p200 = scmp.eq.s32.totalorder %s27, 0
      %p201 = por %p199, %p200
      %p202 = scmp.ne.s32.totalorder %s191, %s194
      %p203 = scmp.eq.s32.totalorder %s32, 1
      %p204 = por %p202, %p203
      %p205 = scmp.ne.s32.totalorder %s194, %s195
      %p206 = scmp.eq.s32.totalorder %s32, 0
      %p207 = por %p205, %p206
      %p208 = scmp.ne.s32.totalorder %s194, %s195
      %p209 = scmp.eq.s32.totalorder %s33, 1
      %p210 = por %p208, %p209
      %p212 = scmp.ne.s32.totalorder %s195, %s211
      %p213 = scmp.eq.s32.totalorder %s33, 0
      %p214 = por %p212, %p213
      %p215 = scmp.le.s32.totalorder 1, %s27
      %p216 = scmp.lt.s32.totalorder %s27, 3
      %p217 = pnand %p215, %p216
      %p218 = pneg %p217
      // Predicated region
      $region9: #{tpu_custom_call.1} parent=5 // pred_check
        _
      $region10: #{tpu_custom_call.1} parent=5 // pred_check_branch
        %220 = sbr.rel (%p217) target = $region12
      $region11: #{tpu_custom_call.1} parent=5 // pred_region
        %s221 = ssub.s32 %s27, 1
      $region12: #{tpu_custom_call.1} parent=5 // pred_fallthru
        _
      %p222 = scmp.lt.s32.totalorder %s27, 2
      // Predicated region
      $region13: #{tpu_custom_call.1} parent=5 // pred_check
        %p223 = pneg %p222
      $region14: #{tpu_custom_call.1} parent=5 // pred_check_branch
        %225 = sbr.rel (%p223) target = $region16
      $region15: #{tpu_custom_call.1} parent=5 // pred_region
        // Predicated region
        $region17: #{tpu_custom_call.1} parent=15 // pred_check
          %p226 = pneg %p61
        $region18: #{tpu_custom_call.1} parent=15 // pred_check_branch
          %228 = sbr.rel (%p226) target = $region20
        $region19: #{tpu_custom_call.1} parent=15 // pred_region
          %s229 = sand.u32 %s51, 1
          %s230 = scalar_lea.sflag [#allocation3], %s229
          %s231 = sand.u32 %s51, 1
          %s232 = smul.addr %s231, 8
          %s233 = scalar_lea.vmem [#allocation2], %s232
          %s235 = ssub.s32 128, 128
          %236 = vsyncadd %s230, %s235
          %s237 = smul.addr %s34, 4
          %s238 = sadd.s32 %s35, %s237
          %s239 = smul.addr %s238, 32
          %s240 = scalar_lea.hbm %s0, %s239
          %s241 = sshll.u32 %s233, 4
          %s242 = int_to_ptr.vmem [resolvable:$true] %s241
          %247 = dma.hbm_to_vmem [thread:$0]  %s240, 128, %s242, %s230, 32, 32, 2
        $region20: #{tpu_custom_call.1} parent=15 // pred_fallthru
          _
        // Predicated region
        $region21: #{tpu_custom_call.1} parent=15 // pred_check
          %p248 = pneg %p89
        $region22: #{tpu_custom_call.1} parent=15 // pred_check_branch
          %250 = sbr.rel (%p248) target = $region24
        $region23: #{tpu_custom_call.1} parent=15 // pred_region
          %s251 = sand.u32 %s79, 1
          %s252 = scalar_lea.sflag [#allocation6], %s251
          %s253 = sand.u32 %s79, 1
          %s254 = smul.addr %s253, 2
          %s255 = scalar_lea.vmem [#allocation5], %s254
          %s257 = ssub.s32 32, 32
          %258 = vsyncadd %s252, %s257
          %s259 = sadd.s32 %s35, %s34
          %s260 = smul.addr %s259, 32
          %s261 = scalar_lea.hbm %s1, %s260
          %s263 = sshll.u32 %s255, 4
          %s264 = int_to_ptr.vmem [resolvable:$true] %s263
          %266 = dma.hbm_to_vmem [thread:$0]  %s261, 32, %s264, %s252
        $region24: #{tpu_custom_call.1} parent=15 // pred_fallthru
          _
      $region16: #{tpu_custom_call.1} parent=5 // pred_fallthru
        _
      %p267 = scmp.le.s32.totalorder 1, %s27
      %p268 = scmp.lt.s32.totalorder %s27, 3
      %p269 = pnand %p267, %p268
      %p270 = pneg %p269
      // Predicated region
      $region25: #{tpu_custom_call.1} parent=5 // pred_check
        _
      $region26: #{tpu_custom_call.1} parent=5 // pred_check_branch
        %272 = sbr.rel (%p269) target = $region28
      $region27: #{tpu_custom_call.1} parent=5 // pred_region
        %s273 = ssub.s32 %s27, 1
        %s274 = sand.u32 %s54, 1
        %s275 = scalar_lea.sflag [#allocation3], %s274
        %s276 = sand.u32 %s54, 1
        %s277 = smul.addr %s276, 8
        %s278 = scalar_lea.vmem [#allocation2], %s277
        // Predicated region
        $region29: #{tpu_custom_call.1} parent=27 // pred_check
          %p279 = pneg %p67
        $region30: #{tpu_custom_call.1} parent=27 // pred_check_branch
          %281 = sbr.rel (%p279) target = $region32
        $region31: #{tpu_custom_call.1} parent=27 // pred_region
          %282 = dma.done %s275, 128
        $region32: #{tpu_custom_call.1} parent=27 // pred_fallthru
          _
        %s283 = sand.u32 %s82, 1
        %s284 = scalar_lea.sflag [#allocation6], %s283
        %s285 = sand.u32 %s82, 1
        %s286 = smul.addr %s285, 2
        %s287 = scalar_lea.vmem [#allocation5], %s286
        // Predicated region
        $region33: #{tpu_custom_call.1} parent=27 // pred_check
          %p288 = pneg %p95
        $region34: #{tpu_custom_call.1} parent=27 // pred_check_branch
          %290 = sbr.rel (%p288) target = $region36
        $region35: #{tpu_custom_call.1} parent=27 // pred_region
          %291 = dma.done %s284, 32
        $region36: #{tpu_custom_call.1} parent=27 // pred_fallthru
          _
        %s292 = sand.u32 %s54, 1
        %s293 = scalar_lea.sflag [#allocation3], %s292
        %s294 = sand.u32 %s54, 1
        %s295 = smul.addr %s294, 8
        %s296 = scalar_lea.vmem [#allocation2], %s295
        %p297 = pneg %p67
        %p298 = pneg %p64
        %s299 = sand.u32 %s82, 1
        %s300 = scalar_lea.sflag [#allocation6], %s299
        %s301 = sand.u32 %s82, 1
        %s302 = smul.addr %s301, 2
        %s303 = scalar_lea.vmem [#allocation5], %s302
        %p304 = pneg %p95
        %p305 = pneg %p92
        %p306 = pneg %p123
        %p307 = pneg %p120
        %s308 = sand.u32 %s110, 1
        %s309 = scalar_lea.sflag [#allocation4], %s308
        %s310 = sand.u32 %s110, 1
        %s311 = smul.addr %s310, 2
        %s312 = scalar_lea.vmem [#allocation7], %s311
        %p313 = pneg %p151
        %p314 = pneg %p148
        %s315 = sand.u32 %s32, 1
        %s316 = scalar_lea.sflag [#allocation9], %s315
        %s317 = sand.u32 %s138, 1
        %s318 = smul.addr %s317, 2
        %s319 = scalar_lea.vmem [#allocation8], %s318
        %p320 = pneg %p179
        %p321 = pneg %p176
        %s322 = sand.u32 %s32, 1
        %s323 = scalar_lea.sflag [#allocation9], %s322
        %s324 = sand.u32 %s166, 1
        %s325 = scalar_lea.vmem [#allocation10], %s324
        %p326 = pneg %p207
        %p327 = pneg %p204
        %s328 = sand.u32 %s194, 1
        %s329 = scalar_lea.sflag [#allocation12], %s328
        %s330 = sand.u32 %s194, 1
        %s331 = scalar_lea.vmem [#allocation11], %s330
        %v332 = vld [vmem:[%s278] sm:$0x3]
        %v333 = vld [vmem:[%s278 + $0x2] sm:$0x3]
        %v334 = vld [vmem:[%s278 + $0x4] sm:$0x3]
        %v335 = vld [vmem:[%s278 + $0x6] sm:$0x3]
        %v336 = vld [vmem:[%s287] sm:$0x3]
        %vm337 = vcmask 1041408
        %v338 = vsel %vm337, %v332, -inf
        %v339 = vsel %vm337, %v333, -inf
        %v340 = vsel %vm337, %v334, -inf
        %v341 = vsel %vm337, %v335, -inf
        %v342 = vmax.f32 %v338, %v339
        %v343 = vmax.f32 %v340, %v341
        %v344 = vmax.f32 %v342, %v343
        %v345 = vsub.f32 %v332, %v344
        %v346 = vsub.f32 %v333, %v344
        %v347 = vsub.f32 %v334, %v344
        %v348 = vsub.f32 %v335, %v344
        %v349 = vmul.f32 %v345, 1.442695
        %v350 = vpow.pop %v349
        %v351 = vmul.f32 %v346, 1.442695
        %v352 = vpow.pop %v351
        %v353 = vmul.f32 %v347, 1.442695
        %v354 = vpow.pop %v353
        %v355 = vmul.f32 %v348, 1.442695
        %v356 = vpow.pop %v355
        %v357 = vsel %vm337, %v350, 0.0
        %v358 = vsel %vm337, %v352, 0.0
        %v359 = vadd.f32 %v357, %v358
        %v360 = vsel %vm337, %v354, 0.0
        %v361 = vadd.f32 %v359, %v360
        %v362 = vsel %vm337, %v356, 0.0
        %v363 = vadd.f32 %v361, %v362
        %v364 = vrcp.pop %v363
        %v365 = vmul.f32 1.0, %v364
        %v366 = vmul.f32 %v350, %v365
        %v367 = vmul.f32 %v352, %v365
        %v368 = vmul.f32 %v354, %v365
        %v369 = vmul.f32 %v356, %v365
        %v370 = vadd.f32 %v366, 1e-08
        %v371 = vadd.f32 %v367, 1e-08
        %v372 = vadd.f32 %v368, 1e-08
        %v373 = vadd.f32 %v369, 1e-08
        %v374 = vlog2.pop %v363
        %v375 = vmul.f32 %v374, 0.6931472
        %v376 = vsub.f32 %v345, %v375
        %v377 = vsub.f32 %v346, %v375
        %v378 = vsub.f32 %v347, %v375
        %v379 = vsub.f32 %v348, %v375
        %v380 = vsel %vm337, %v370, 0.0
        %v381 = vsel %vm337, %v371, 0.0
        %v382 = vadd.f32 %v380, %v381
        %v383 = vsel %vm337, %v372, 0.0
        %v384 = vadd.f32 %v382, %v383
        %v385 = vsel %vm337, %v373, 0.0
        %v386 = vadd.f32 %v384, %v385
        %v387 = vmul.f32 %v386, 0.25
        %v388 = vsub.f32 %v370, %v387
        %v389 = vsub.f32 %v371, %v387
        %v390 = vsub.f32 %v372, %v387
        %v391 = vsub.f32 %v373, %v387
        %v392 = vmul.f32 %v388, %v388
        %v393 = vmul.f32 %v389, %v389
        %v394 = vmul.f32 %v390, %v390
        %v395 = vmul.f32 %v391, %v391
        %v396 = vsel %vm337, %v392, 0.0
        %v397 = vsel %vm337, %v393, 0.0
        %v398 = vadd.f32 %v396, %v397
        %v399 = vsel %vm337, %v394, 0.0
        %v400 = vadd.f32 %v398, %v399
        %v401 = vsel %vm337, %v395, 0.0
        %v402 = vadd.f32 %v400, %v401
        %v403 = vmul.f32 %v402, 0.33333334
        %v404 = vrsqrt.pop %v403
        %v405 = vmul.f32 %v403, %v404
        %vm406 = vcmp.eq.f32.partialorder %v403, inf
        %v407 = vsel %vm406, %v403, %v405
        %vm408 = vcmp.eq.f32.partialorder %v403, 0.0
        %v409 = vand.u32 %v403, 2147483648
        %v410 = vsel %vm408, %v409, %v407
        %411 = vst [vmem:[%s312] sm:$0x3] %v410
        %vm412 = vcmp.eq.s32.totalorder %v336, 0
        %vm413 = vcmp.eq.s32.totalorder %v336, 1
        %vm414 = vcmp.eq.s32.totalorder %v336, 2
        %vm415 = vcmp.eq.s32.totalorder %v336, 3
        %v416 = vsel %vm412, 1, 0
        %v417 = vsel %vm413, 1, 0
        %v418 = vsel %vm414, 1, 0
        %v419 = vsel %vm415, 1, 0
        %v420 = vcvt.s32.f32 %v416
        %v421 = vcvt.s32.f32 %v417
        %v422 = vcvt.s32.f32 %v418
        %v423 = vcvt.s32.f32 %v419
        %v424 = vadd.f32 %v420, 1e-06
        %v425 = vadd.f32 %v421, 1e-06
        %v426 = vadd.f32 %v422, 1e-06
        %v427 = vadd.f32 %v423, 1e-06
        %v428 = vsub.f32 1.0, %v370
        %v429 = vsub.f32 1.0, %v371
        %v430 = vsub.f32 1.0, %v372
        %v431 = vsub.f32 1.0, %v373
        %v432 = vmul.f32 %v428, %v428
        %v433 = vmul.f32 %v429, %v429
        %v434 = vmul.f32 %v430, %v430
        %v435 = vmul.f32 %v431, %v431
        %v436 = vmul.f32 %v432, -0.5
        %v437 = vmul.f32 %v433, -0.5
        %v438 = vmul.f32 %v434, -0.5
        %v439 = vmul.f32 %v435, -0.5
        %v440 = vmul.f32 %v436, %v376
        %v441 = vmul.f32 %v437, %v377
        %v442 = vmul.f32 %v438, %v378
        %v443 = vmul.f32 %v439, %v379
        %v444 = vmul.f32 %v424, %v440
        %v445 = vmul.f32 %v425, %v441
        %v446 = vmul.f32 %v426, %v442
        %v447 = vmul.f32 %v427, %v443
        %v448 = vsel %vm337, %v444, 0.0
        %v449 = vsel %vm337, %v445, 0.0
        %v450 = vadd.f32 %v448, %v449
        %v451 = vsel %vm337, %v446, 0.0
        %v452 = vadd.f32 %v450, %v451
        %v453 = vsel %vm337, %v447, 0.0
        %v454 = vadd.f32 %v452, %v453
        %455 = vst [vmem:[%s319] sm:$0x3] %v454
        %v456 = vsel %vm337, %v410, inf
        %v457 = vrot.slane %v456, 4
        %v458 = vmin.f32 %v456, %v457
        %v459 = vrot.slane %v458, 2
        %v460 = vmin.f32 %v458, %v459
        %v461 = vrot.slane %v460, 1
        %v462 = vmin.f32 %v460, %v461
        %463 = vst [vmem:[%s325] sm:$0x1] %v462
        %v464 = vsel %vm337, %v410, -inf
        %v465 = vrot.slane %v464, 4
        %v466 = vmax.f32 %v464, %v465
        %v467 = vrot.slane %v466, 2
        %v468 = vmax.f32 %v466, %v467
        %v469 = vrot.slane %v468, 1
        %v470 = vmax.f32 %v468, %v469
        %471 = vst [vmem:[%s331] sm:$0x1] %v470
        %s472 = sand.u32 %s110, 1
        %s473 = scalar_lea.sflag [#allocation4], %s472
        %s474 = sand.u32 %s110, 1
        %s475 = smul.addr %s474, 2
        %s476 = scalar_lea.vmem [#allocation7], %s475
        %s477 = sand.u32 %s32, 1
        %s478 = scalar_lea.sflag [#allocation9], %s477
        %s479 = sand.u32 %s138, 1
        %s480 = smul.addr %s479, 2
        %s481 = scalar_lea.vmem [#allocation8], %s480
        %s482 = sand.u32 %s32, 1
        %s483 = scalar_lea.sflag [#allocation9], %s482
        %s484 = sand.u32 %s166, 1
        %s485 = scalar_lea.vmem [#allocation10], %s484
        %s486 = sand.u32 %s194, 1
        %s487 = scalar_lea.sflag [#allocation12], %s486
        %s488 = sand.u32 %s194, 1
        %s489 = scalar_lea.vmem [#allocation11], %s488
        // Predicated region
        $region37: #{tpu_custom_call.1} parent=27 // pred_check
          %p490 = pneg %p120
        $region38: #{tpu_custom_call.1} parent=27 // pred_check_branch
          %492 = sbr.rel (%p490) target = $region40
        $region39: #{tpu_custom_call.1} parent=27 // pred_region
          %s494 = ssub.s32 32, 32
          %495 = vsyncadd %s473, %s494
          %s496 = sadd.s32 %s37, %s36
          %s497 = smul.addr %s496, 32
          %s498 = scalar_lea.hbm %s2, %s497
          %s500 = sshll.u32 %s476, 4
          %s501 = int_to_ptr.vmem [resolvable:$true] %s500
          %503 = dma.vmem_to_hbm [thread:$0]  %s501, 32, %s498, %s473
        $region40: #{tpu_custom_call.1} parent=27 // pred_fallthru
          _
        // Predicated region
        $region41: #{tpu_custom_call.1} parent=27 // pred_check
          %p504 = pneg %p148
        $region42: #{tpu_custom_call.1} parent=27 // pred_check_branch
          %506 = sbr.rel (%p504) target = $region44
        $region43: #{tpu_custom_call.1} parent=27 // pred_region
          %s508 = ssub.s32 32, 32
          %509 = vsyncadd %s478, %s508
          %s510 = sadd.s32 %s37, %s36
          %s511 = smul.addr %s510, 32
          %s512 = scalar_lea.hbm %s3, %s511
          %s514 = sshll.u32 %s481, 4
          %s515 = int_to_ptr.vmem [resolvable:$true] %s514
          %517 = dma.vmem_to_hbm [thread:$0]  %s515, 32, %s512, %s478
        $region44: #{tpu_custom_call.1} parent=27 // pred_fallthru
          _
        // Predicated region
        $region45: #{tpu_custom_call.1} parent=27 // pred_check
          %p518 = pneg %p176
        $region46: #{tpu_custom_call.1} parent=27 // pred_check_branch
          %520 = sbr.rel (%p518) target = $region48
        $region47: #{tpu_custom_call.1} parent=27 // pred_region
          %s522 = ssub.s32 16, 16
          %523 = vsyncadd %s483, %s522
          %s524 = sadd.s32 %s37, %s36
          %s525 = smul.addr %s524, 16
          %s526 = scalar_lea.hbm %s4, %s525
          %s528 = sshll.u32 %s485, 4
          %s529 = int_to_ptr.vmem [resolvable:$true] %s528
          %531 = dma.vmem_to_hbm [thread:$0]  %s529, 16, %s526, %s483
        $region48: #{tpu_custom_call.1} parent=27 // pred_fallthru
          _
        // Predicated region
        $region49: #{tpu_custom_call.1} parent=27 // pred_check
          %p532 = pneg %p204
        $region50: #{tpu_custom_call.1} parent=27 // pred_check_branch
          %534 = sbr.rel (%p532) target = $region52
        $region51: #{tpu_custom_call.1} parent=27 // pred_region
          %s536 = ssub.s32 16, 16
          %537 = vsyncadd %s487, %s536
          %s538 = sadd.s32 %s37, %s36
          %s539 = smul.addr %s538, 16
          %s540 = scalar_lea.hbm %s5, %s539
          %s542 = sshll.u32 %s489, 4
          %s543 = int_to_ptr.vmem [resolvable:$true] %s542
          %545 = dma.vmem_to_hbm [thread:$0]  %s543, 16, %s540, %s487
        $region52: #{tpu_custom_call.1} parent=27 // pred_fallthru
          _
      $region28: #{tpu_custom_call.1} parent=5 // pred_fallthru
        _
      %p546 = scmp.le.s32.totalorder 2, %s27
      // Predicated region
      $region53: #{tpu_custom_call.1} parent=5 // pred_check
        %p547 = pneg %p546
      $region54: #{tpu_custom_call.1} parent=5 // pred_check_branch
        %549 = sbr.rel (%p547) target = $region56
      $region55: #{tpu_custom_call.1} parent=5 // pred_region
        %s550 = ssub.s32 %s27, 2
        // Predicated region
        $region57: #{tpu_custom_call.1} parent=55 // pred_check
          %p551 = pneg %p126
        $region58: #{tpu_custom_call.1} parent=55 // pred_check_branch
          %553 = sbr.rel (%p551) target = $region60
        $region59: #{tpu_custom_call.1} parent=55 // pred_region
          %s554 = sand.u32 %s111, 1
          %s555 = scalar_lea.sflag [#allocation4], %s554
          %s556 = sand.u32 %s111, 1
          %s557 = smul.addr %s556, 2
          %s558 = scalar_lea.vmem [#allocation7], %s557
          %559 = dma.done %s555, 32
        $region60: #{tpu_custom_call.1} parent=55 // pred_fallthru
          _
        // Predicated region
        $region61: #{tpu_custom_call.1} parent=55 // pred_check
          %p560 = pneg %p154
        $region62: #{tpu_custom_call.1} parent=55 // pred_check_branch
          %562 = sbr.rel (%p560) target = $region64
        $region63: #{tpu_custom_call.1} parent=55 // pred_region
          %s563 = sand.u32 %s33, 1
          %s564 = scalar_lea.sflag [#allocation9], %s563
          %s565 = sand.u32 %s139, 1
          %s566 = smul.addr %s565, 2
          %s567 = scalar_lea.vmem [#allocation8], %s566
          %568 = dma.done %s564, 32
        $region64: #{tpu_custom_call.1} parent=55 // pred_fallthru
          _
        // Predicated region
        $region65: #{tpu_custom_call.1} parent=55 // pred_check
          %p569 = pneg %p182
        $region66: #{tpu_custom_call.1} parent=55 // pred_check_branch
          %571 = sbr.rel (%p569) target = $region68
        $region67: #{tpu_custom_call.1} parent=55 // pred_region
          %s572 = sand.u32 %s33, 1
          %s573 = scalar_lea.sflag [#allocation9], %s572
          %s574 = sand.u32 %s167, 1
          %s575 = scalar_lea.vmem [#allocation10], %s574
          %576 = dma.done %s573, 16
        $region68: #{tpu_custom_call.1} parent=55 // pred_fallthru
          _
        // Predicated region
        $region69: #{tpu_custom_call.1} parent=55 // pred_check
          %p577 = pneg %p210
        $region70: #{tpu_custom_call.1} parent=55 // pred_check_branch
          %579 = sbr.rel (%p577) target = $region72
        $region71: #{tpu_custom_call.1} parent=55 // pred_region
          %s580 = sand.u32 %s195, 1
          %s581 = scalar_lea.sflag [#allocation12], %s580
          %s582 = sand.u32 %s195, 1
          %s583 = scalar_lea.vmem [#allocation11], %s582
          %584 = dma.done %s581, 16
        $region72: #{tpu_custom_call.1} parent=55 // pred_fallthru
          _
      $region56: #{tpu_custom_call.1} parent=5 // pred_fallthru
        _
    $region6: #{tpu_custom_call.1} parent=1 // loop_footer
      %s31 = sadd.s32 1, %s27
    $region7: #{tpu_custom_call.1} parent=1 // loop_footer_branch
      %26 = sbr.rel target = $region3
    $region8: #{tpu_custom_call.1} parent=1 // loop_exit
      _
    %585 = vsyncpa [#allocation3], 1
    %s586 = scalar_lea.sflag [#allocation3], 1
    %587 = vsyncpa %s586, 1
    %588 = vsyncpa [#allocation6], 1
    %s589 = scalar_lea.sflag [#allocation6], 1
    %590 = vsyncpa %s589, 1
    %591 = vsyncpa [#allocation4], 1
    %s592 = scalar_lea.sflag [#allocation4], 1
    %593 = vsyncpa %s592, 1
    %594 = vsyncpa [#allocation9], 1
    %s595 = scalar_lea.sflag [#allocation9], 1
    %596 = vsyncpa %s595, 1
    %597 = vsyncpa [#allocation12], 1
    %s598 = scalar_lea.sflag [#allocation12], 1
    %599 = vsyncpa %s598, 1

</llo_original>
